<compile_context>
chip_gen: v7x
topology: tpu7x:2x2x1
jax: 0.10.0
libtpu: 0.0.40
codegen_flags: <defaults>
</compile_context>

<pallas_src>
import math
import functools

import jax
import jax.numpy as jnp
from jax.experimental import pallas as pl
from jax.experimental.pallas import tpu as pltpu


def _round_up(x, m):
    return ((x + m - 1) // m) * m


def _node_emb_kernel(x_ref, w_ref, b_ref, o_ref):
    # y = x @ (W^T * sqrt(d_emb)) + bias * sqrt(d_emb)   (scale folded in wrapper)
    y = jnp.dot(x_ref[...], w_ref[...], preferred_element_type=jnp.float32)
    o_ref[...] = (y + b_ref[...]).astype(o_ref.dtype)


def _node_emb_dropout_kernel(x_ref, w_ref, b_ref, m_ref, o_ref):
    # m_ref holds 0 or 1/(1-p) per element (inverted dropout), fused epilogue.
    y = jnp.dot(x_ref[...], w_ref[...], preferred_element_type=jnp.float32)
    o_ref[...] = ((y + b_ref[...]) * m_ref[...]).astype(o_ref.dtype)


def node_embeddings_forward(x, weight, bias, *, dropout_p=0.1,
                            training=False, rng_key=None, tm=256):
    """x: (..., d_atom) float32; weight: (d_emb, d_atom); bias: (d_emb,)."""
    d_emb, d_atom = int(weight.shape[0]), int(weight.shape[1])
    lead = x.shape[:-1]
    m = 1
    for s in lead:
        m *= int(s)

    x2 = x.reshape(m, d_atom).astype(jnp.float32)

    # Rows: pad only to a sublane multiple (<= 7 extra rows), never to tm.
    m8 = _round_up(m, 8)
    if m8 != m:
        x2 = jnp.pad(x2, ((0, m8 - m), (0, 0)))

    # Row tile: as large as requested but clamped to the padded row count.
    tm_eff = max(8, (min(int(tm), m8) // 8) * 8)
    grid_m = pl.cdiv(m8, tm_eff)

    # Lane-dense output: pad the embedding axis to a multiple of 128
    # (padding only touches the small weight/bias tensors).
    n_pad = _round_up(d_emb, 128)
    scale = math.sqrt(float(d_emb))
    w_t = (weight.T.astype(jnp.float32)) * scale          # (d_atom, d_emb)
    b_row = (bias.astype(jnp.float32) * scale).reshape(1, d_emb)
    if n_pad != d_emb:
        w_t = jnp.pad(w_t, ((0, 0), (0, n_pad - d_emb)))
        b_row = jnp.pad(b_row, ((0, 0), (0, n_pad - d_emb)))

    apply_dropout = bool(training) and float(dropout_p) > 0.0

    in_specs = [
        pl.BlockSpec((tm_eff, d_atom), lambda i: (i, 0)),   # x row tile
        pl.BlockSpec((d_atom, n_pad), lambda i: (0, 0)),    # resident W^T * scale
        pl.BlockSpec((1, n_pad), lambda i: (0, 0)),         # resident bias row
    ]
    args = [x2, w_t, b_row]
    kernel = _node_emb_kernel
    mask_bytes = 0

    if apply_dropout:
        if rng_key is None:
            rng_key = jax.random.PRNGKey(0)
        keep = jax.random.bernoulli(rng_key, 1.0 - float(dropout_p), (m8, n_pad))
        drop_scale = keep.astype(jnp.float32) * (1.0 / (1.0 - float(dropout_p)))
        in_specs.append(pl.BlockSpec((tm_eff, n_pad), lambda i: (i, 0)))
        args.append(drop_scale)
        kernel = _node_emb_dropout_kernel
        mask_bytes = 4 * m8 * n_pad

    cost = pl.CostEstimate(
        flops=2 * m8 * d_atom * n_pad,
        transcendentals=0,
        bytes_accessed=4 * (m8 * d_atom + d_atom * n_pad + n_pad + m8 * n_pad)
                       + mask_bytes,
    )

    out = pl.pallas_call(
        kernel,
        out_shape=jax.ShapeDtypeStruct((m8, n_pad), jnp.float32),
        grid=(grid_m,),
        in_specs=in_specs,
        out_specs=pl.BlockSpec((tm_eff, n_pad), lambda i: (i, 0)),
        compiler_params=pltpu.CompilerParams(
            dimension_semantics=("parallel",)),
        cost_estimate=cost,
    )(*args)

    return out[:m, :d_emb].reshape(*lead, d_emb).astype(x.dtype)


def node_embeddings_ref(x, weight, bias, d_emb):
    # pure-JAX reference (eval mode: dropout is identity)
    return (jnp.einsum("...k,nk->...n", x, weight) + bias) * math.sqrt(d_emb)


if __name__ == "__main__":
    # small, deterministic setup consistent with the module
    d_atom, d_emb, dropout_p = 16, 32, 0.1
    B, L = 2, 8

    key = jax.random.PRNGKey(0)
    kx, kw, kb, kd = jax.random.split(key, 4)

    # deterministic nn.Linear-style init (uniform in +-1/sqrt(d_atom))
    bound = 1.0 / math.sqrt(d_atom)
    weight = jax.random.uniform(kw, (d_emb, d_atom), jnp.float32, -bound, bound)
    bias = jax.random.uniform(kb, (d_emb,), jnp.float32, -bound, bound)

    x = jax.random.normal(kx, (B, L, d_atom), jnp.float32)

    # eval-mode forward (dropout = identity), matches PyTorch module.eval()
    out = node_embeddings_forward(x, weight, bias,
                                  dropout_p=dropout_p, training=False)
    out = jax.block_until_ready(out)

    ref = node_embeddings_ref(x, weight, bias, d_emb)
    assert out.shape == (B, L, d_emb)
    assert jnp.allclose(out, ref, atol=1e-5, rtol=1e-5), "mismatch vs reference"

    # also exercise the training-mode (fused dropout) path once
    out_train = jax.block_until_ready(
        node_embeddings_forward(x, weight, bias, dropout_p=dropout_p,
                                training=True, rng_key=kd))
    assert out_train.shape == (B, L, d_emb)
    assert bool(jnp.all(jnp.isfinite(out_train)))
    # surviving elements equal ref / (1-p); dropped ones are 0
    ratio = jnp.where(out_train != 0.0, out_train / ref, 1.0 / (1.0 - dropout_p))
    assert jnp.allclose(ratio, 1.0 / (1.0 - dropout_p), atol=1e-4, rtol=1e-4)

    print("KERNEL_OK")
</pallas_src>

<mosaic_0001>
module attributes {stable_mosaic.version = 11 : i64} {
  func.func @_node_emb_kernel(%arg0: i32, %arg1: memref<16x16xf32, #tpu.memory_space<vmem>>, %arg2: memref<16x128xf32, #tpu.memory_space<vmem>>, %arg3: memref<1x128xf32, #tpu.memory_space<vmem>>, %arg4: memref<16x128xf32, #tpu.memory_space<vmem>>) attributes {dimension_semantics = [#tpu.dimension_semantics<parallel>], iteration_bounds = array<i64: 1>, scalar_prefetch = 0 : i64, scratch_operands = 0 : i64, tpu.core_type = #tpu.core_type<tc>, window_params = [{transform_indices = @transform_0, window_bounds = array<i64: 16, 16>}, {pipeline_mode = #tpu.pipeline_mode<synchronous>, transform_indices = @transform_1, window_bounds = array<i64: 16, 128>}, {pipeline_mode = #tpu.pipeline_mode<synchronous>, transform_indices = @transform_2, window_bounds = array<i64: 1, 128>}, {transform_indices = @transform_3, window_bounds = array<i64: 16, 128>}]} {
    %c0 = arith.constant 0 : index
    %c0_0 = arith.constant 0 : index
    %0 = vector.load %arg1[%c0, %c0_0] : memref<16x16xf32, #tpu.memory_space<vmem>>, vector<16x16xf32>
    %c0_1 = arith.constant 0 : index
    %c0_2 = arith.constant 0 : index
    %1 = vector.load %arg2[%c0_1, %c0_2] : memref<16x128xf32, #tpu.memory_space<vmem>>, vector<16x128xf32>
    %cst = arith.constant dense<0.000000e+00> : vector<16x128xf32>
    %2 = tpu.matmul %0, %1, %cst {dimension_numbers = #tpu.dot_dimension_numbers<[1], [0], [0], [1], [0, 0, 1, 1], [], []>} : vector<16x16xf32>, vector<16x128xf32>, vector<16x128xf32> -> vector<16x128xf32>
    %c0_3 = arith.constant 0 : index
    %c0_4 = arith.constant 0 : index
    %3 = vector.load %arg3[%c0_3, %c0_4] : memref<1x128xf32, #tpu.memory_space<vmem>>, vector<1x128xf32>
    %4 = vector.broadcast %3 : vector<1x128xf32> to vector<16x128xf32>
    %5 = arith.addf %2, %4 : vector<16x128xf32>
    %c0_5 = arith.constant 0 : index
    %c0_6 = arith.constant 0 : index
    %6 = vector.load %arg4[%c0_5, %c0_6] : memref<16x128xf32, #tpu.memory_space<vmem>>, vector<16x128xf32>
    tpu.vector_store %arg4[%c0_5, %c0_6], %5 {strides = array<i32>} : memref<16x128xf32, #tpu.memory_space<vmem>>, vector<16x128xf32>,
    return
  }
  func.func @transform_0(%arg0: i32) -> (i32, i32) {
    %c0_i32 = arith.constant 0 : i32
    %c0_i32_0 = arith.constant 0 : i32
    return %arg0, %c0_i32 : i32, i32
  }
  func.func @transform_1(%arg0: i32) -> (i32, i32) {
    %c0_i32 = arith.constant 0 : i32
    %c0_i32_0 = arith.constant 0 : i32
    %c0_i32_1 = arith.constant 0 : i32
    return %c0_i32, %c0_i32_0 : i32, i32
  }
  func.func @transform_2(%arg0: i32) -> (i32, i32) {
    %c0_i32 = arith.constant 0 : i32
    %c0_i32_0 = arith.constant 0 : i32
    %c0_i32_1 = arith.constant 0 : i32
    return %c0_i32, %c0_i32_0 : i32, i32
  }
  func.func @transform_3(%arg0: i32) -> (i32, i32) {
    %c0_i32 = arith.constant 0 : i32
    %c0_i32_0 = arith.constant 0 : i32
    return %arg0, %c0_i32 : i32, i32
  }
}

</mosaic_0001>

<llo_original>
// kernel: tpu_custom_call.1
$region0: #{tpu_custom_call.1}
  #allocation0 [shape = 'u32[]', space=smem, size = 0x4, offset = 0x4, fixed_abs, tag = 'smem constant byte address 0x4 - core index']
  #allocation1 [shape = 'u32[144,128]{1,0:T(1,128)}', space=vmem, size = 0x12000, scoped, tag = 'internal scratch']
  %s0 = inlined_call_operand.hbm [shape: f32[16,16], index: 0, kind: input, shape index: {}]
  %s1 = inlined_call_operand.hbm [shape: f32[16,128], index: 1, kind: input, shape index: {}]
  %s2 = inlined_call_operand.vmem [shape: f32[1,128], index: 2, kind: input, shape index: {}]
  %s3 = inlined_call_operand.hbm [shape: f32[16,128], index: 3, kind: output, shape index: {}]
  %s4 = sld [smem:[#allocation0]]
  $region30: #{tpu_custom_call.1} parent=0
    _
  %s6 = ssub.s32 1, %s4
  %s7 = scalar_select 0, %s6, %s4
  $region1: #{tpu_custom_call.1} parent=0
    #allocation2 [shape = 'u8[8192]{0}', space=vmem, size = 0x2000, scoped, tag = 'input window, operand 0, single buffered']
    #allocation3 [shape = 's32[1]{0}', space=sflag, size = 0x4, scoped, tag = 'scoped memory for tpu_custom_call.1']
    #allocation4 [shape = 's32[1]{0}', space=sflag, size = 0x4, scoped, tag = 'scoped memory for tpu_custom_call.1']
    #allocation5 [shape = 'u8[8192]{0}', space=vmem, size = 0x2000, scoped, tag = 'input window, operand 1, single buffered']
    #allocation6 [shape = 's32[1]{0}', space=sflag, size = 0x4, scoped, tag = 'scoped memory for tpu_custom_call.1']
    #allocation7 [shape = 'u8[8192]{0}', space=vmem, size = 0x2000, scoped, tag = 'output window, operand 0, single buffered']
    %8 = vsyncpa [#allocation3], 0
    %9 = vsyncpa [#allocation6], 0
    %10 = vsyncpa [#allocation4], 0
    // Predicated region
    $region2: #{tpu_custom_call.1} parent=1 // pred_check
      _
    $region3: #{tpu_custom_call.1} parent=1 // pred_check_branch
      %12 = sbr.rel (0) target = $region5
    $region4: #{tpu_custom_call.1} parent=1 // pred_region
      %s14 = ssub.s32 256, 256
      %15 = vsyncadd [#allocation3], %s14
      %s16 = sshll.u32 [#allocation2], 4
      %s17 = int_to_ptr.vmem [resolvable:$true] %s16
      %22 = dma.hbm_to_vmem [thread:$0]  %s0, 256, %s17, [#allocation3], 128, 128, 8
    $region5: #{tpu_custom_call.1} parent=1 // pred_fallthru
      _
    // Predicated region
    $region6: #{tpu_custom_call.1} parent=1 // pred_check
      _
    $region7: #{tpu_custom_call.1} parent=1 // pred_check_branch
      %24 = sbr.rel (0) target = $region9
    $region8: #{tpu_custom_call.1} parent=1 // pred_region
      %s26 = ssub.s32 256, 256
      %27 = vsyncadd [#allocation6], %s26
      %s28 = sshll.u32 [#allocation5], 4
      %s29 = int_to_ptr.vmem [resolvable:$true] %s28
      %34 = dma.hbm_to_vmem [thread:$0]  %s1, 256, %s29, [#allocation6], 128, 128, 8
    $region9: #{tpu_custom_call.1} parent=1 // pred_fallthru
      _
    // Predicated region
    $region10: #{tpu_custom_call.1} parent=1 // pred_check
      _
    $region11: #{tpu_custom_call.1} parent=1 // pred_check_branch
      %36 = sbr.rel (0) target = $region13
    $region12: #{tpu_custom_call.1} parent=1 // pred_region
      _
    $region13: #{tpu_custom_call.1} parent=1 // pred_fallthru
      _
    // Predicated region
    $region14: #{tpu_custom_call.1} parent=1 // pred_check
      _
    $region15: #{tpu_custom_call.1} parent=1 // pred_check_branch
      %38 = sbr.rel (0) target = $region17
    $region16: #{tpu_custom_call.1} parent=1 // pred_region
      %39 = dma.done [#allocation3], 256
    $region17: #{tpu_custom_call.1} parent=1 // pred_fallthru
      _
    // Predicated region
    $region18: #{tpu_custom_call.1} parent=1 // pred_check
      _
    $region19: #{tpu_custom_call.1} parent=1 // pred_check_branch
      %41 = sbr.rel (0) target = $region21
    $region20: #{tpu_custom_call.1} parent=1 // pred_region
      %42 = dma.done [#allocation6], 256
    $region21: #{tpu_custom_call.1} parent=1 // pred_fallthru
      _
    %v43 = vld [vmem:[#allocation2] sm:$0xff]
    %v44 = vld [vmem:[#allocation2 + $0x8] sm:$0xff]
    %v45 = vld [vmem:[#allocation5] sm:$0xff]
    %v46 = vld [vmem:[#allocation5 + $0x8] sm:$0xff]
    %v47 = vld [vmem:[%s2] sm:$0x1]
    %v49 = vlaneseq
    %v50 = vshrl.u32 %v49, 7
    %v51 = vsub.s32 0, %v50
    %v52 = vrot.slane %v47, %v51
    %vm54 = vcmask 130048
    %v56 = vsel %vm54, %v43, 0
    %v59 = vsel %vm54, %v44, 0
    %61 = vmatprep.subr.mxu0 0.0
    %62 = vmatpush1.msra.mxu0 %v45
    %63 = vmatprep.subr.mxu0 0.0
    %64 = vmatpush1.msra.mxu0 %v46
    %65 = vmatprep.subr.mxu0 0.0
    %66 = vmatpush1.msra.mxu0 0.0
    %67 = vmatprep.subr.mxu0 0.0
    %68 = vmatpush1.msra.mxu0 0.0
    %69 = vmatprep.subr.mxu0 0.0
    %70 = vmatpush1.msra.mxu0 0.0
    %71 = vmatprep.subr.mxu0 0.0
    %72 = vmatpush1.msra.mxu0 0.0
    %73 = vmatprep.subr.mxu0 0.0
    %74 = vmatpush1.msra.mxu0 0.0
    %75 = vmatprep.subr.mxu0 0.0
    %76 = vmatpush1.msra.mxu0 0.0
    %77 = vmatprep.subr.mxu0 0.0
    %78 = vmatpush1.msra.mxu0 0.0
    %79 = vmatprep.subr.mxu0 0.0
    %80 = vmatpush1.msra.mxu0 0.0
    %81 = vmatprep.subr.mxu0 0.0
    %82 = vmatpush1.msra.mxu0 0.0
    %83 = vmatprep.subr.mxu0 0.0
    %84 = vmatpush1.msra.mxu0 0.0
    %85 = vmatprep.subr.mxu0 0.0
    %86 = vmatpush1.msra.mxu0 0.0
    %87 = vmatprep.subr.mxu0 0.0
    %88 = vmatpush1.msra.mxu0 0.0
    %89 = vmatprep.subr.mxu0 0.0
    %90 = vmatpush1.msra.mxu0 0.0
    %91 = vmatprep.subr.mxu0 0.0
    %92 = vmatpush1.msra.mxu0 0.0
    %93 = vmatprep.subr.mxu0 0.0
    %94 = vmatpush1.msra.mxu0 0.0
    %95 = vmatprep.subr.mxu0 0.0
    %96 = vmatpush1.msra.mxu0 0.0
    %97 = vmatprep.subr.mxu0 0.0
    %98 = vmatpush1.msra.mxu0 0.0
    %99 = vmatprep.subr.mxu0 0.0
    %100 = vmatpush1.msra.mxu0 0.0
    %101 = vmatprep.subr.mxu0 0.0
    %102 = vmatpush1.msra.mxu0 0.0
    %103 = vmatprep.subr.mxu0 0.0
    %104 = vmatpush1.msra.mxu0 0.0
    %105 = vmatprep.subr.mxu0 0.0
    %106 = vmatpush1.msra.mxu0 0.0
    %107 = vmatprep.subr.mxu0 0.0
    %108 = vmatpush1.msra.mxu0 0.0
    %109 = vmatprep.subr.mxu0 0.0
    %110 = vmatpush1.msra.mxu0 0.0
    %111 = vmatprep.subr.mxu0 0.0
    %112 = vmatpush1.msra.mxu0 0.0
    %113 = vmatprep.subr.mxu0 0.0
    %114 = vmatpush1.msra.mxu0 0.0
    %115 = vmatprep.subr.mxu0 0.0
    %116 = vmatpush1.msra.mxu0 0.0
    %117 = vmatprep.subr.mxu0 0.0
    %118 = vmatpush1.msra.mxu0 0.0
    %119 = vmatprep.subr.mxu0 0.0
    %120 = vmatpush1.msra.mxu0 0.0
    %121 = vmatprep.subr.mxu0 0.0
    %122 = vmatpush1.msra.mxu0 0.0
    %123 = vmatprep.subr.mxu0 0.0
    %124 = vmatpush1.msra.mxu0 0.0
    %125 = vmatprep.mubr.f32.mxu0 0.0
    %126 = vmatmul.mubr.f32.gmra.mrb[0].mxu0 %v56
    %v127 = vpop.f32.mrb[0].mxu0
    %v128 = vadd.f32 %v52, %v127
    %v129 = vpop.f32.mrb[0].mxu0
    %130 = vmatprep.mubr.f32.mxu0 0.0
    %131 = vmatmul.mubr.f32.gmra.mrb[0].mxu0 %v59
    %v132 = vpop.f32.mrb[0].mxu0
    %v133 = vadd.f32 %v52, %v132
    %v134 = vpop.f32.mrb[0].mxu0
    %135 = vdwg.mxu0
    %136 = vst [vmem:[#allocation7] sm:$0xff] %v128
    %137 = vst [vmem:[#allocation7 + $0x8] sm:$0xff] %v133
    // Predicated region
    $region22: #{tpu_custom_call.1} parent=1 // pred_check
      _
    $region23: #{tpu_custom_call.1} parent=1 // pred_check_branch
      %139 = sbr.rel (0) target = $region25
    $region24: #{tpu_custom_call.1} parent=1 // pred_region
      %s141 = ssub.s32 256, 256
      %142 = vsyncadd [#allocation4], %s141
      %s143 = sshll.u32 [#allocation7], 4
      %s144 = int_to_ptr.vmem [resolvable:$true] %s143
      %149 = dma.vmem_to_hbm [thread:$0]  %s144, 256, %s3, [#allocation4], 128, 128, 8
    $region25: #{tpu_custom_call.1} parent=1 // pred_fallthru
      _
    // Predicated region
    $region26: #{tpu_custom_call.1} parent=1 // pred_check
      _
    $region27: #{tpu_custom_call.1} parent=1 // pred_check_branch
      %151 = sbr.rel (0) target = $region29
    $region28: #{tpu_custom_call.1} parent=1 // pred_region
      %152 = dma.done [#allocation4], 256
    $region29: #{tpu_custom_call.1} parent=1 // pred_fallthru
      _
    %153 = vsyncpa [#allocation3], 1
    %154 = vsyncpa [#allocation6], 1
    %155 = vsyncpa [#allocation4], 1

</llo_original>
